<compile_context>
chip_gen: v6e
topology: v6e:2x2x1
jax: 0.10.0
libtpu: 0.0.40
codegen_flags: <defaults>
</compile_context>

<pallas_src>
import functools

import jax
import jax.numpy as jnp
from jax import lax
from jax.experimental import pallas as pl
from jax.experimental.pallas import tpu as pltpu

PATCH = 8
EPS = 1e-5
_LANES = 128                              # lane-dense accumulator width
_BLOCK_BUDGET_BYTES = 4 * 1024 * 1024     # per input block, in input-dtype bytes
_VMEM_LIMIT_BYTES = 32 * 1024 * 1024      # explicit scoped-VMEM request (all gens)


# --------------------------------------------------------------------------
# Pallas kernel: per-(batch, split) sums of squared patch-strided differences
# --------------------------------------------------------------------------
def _rtv_sums_kernel(patch, x_ref, o_ref):
    """x_ref: (c_tile, W, H) VMEM tile of one batch element / channel chunk.

    o_ref: (1, 128) f32 accumulator, resident across the C-chunk grid axis:
      lane 0: sum (x[w+p,h]-x[w,h])^2            (original image, W axis)
      lane 1: sum (x[w,h+p]-x[w,h])^2            (original image, H axis)
      lane 2: lane 0 for the half-period circularly shifted image
      lane 3: lane 1 for the half-period circularly shifted image
      lanes 4..127: zero
    """
    p = patch
    x = x_ref[...]                        # keep input dtype; no full-tile f32 copy
    _, W, H = x.shape

    def sqsum(a, b):
        d = (a - b).astype(jnp.float32)   # diff in input dtype, square/acc in f32
        return jnp.sum(d * d)

    # ---- W axis (sublanes, dim 1): stride-p differences, fused sub/sq/reduce.
    s1 = sqsum(x[:, p:, :], x[:, :-p, :])
    seam1 = sqsum(x[:, W // 2:W // 2 + p, :], x[:, W // 2 - p:W // 2, :])
    wrap1 = sqsum(x[:, :p, :], x[:, W - p:, :])
    s1_shift = s1 - seam1 + wrap1

    # ---- H axis (lanes, dim 2).
    s2 = sqsum(x[:, :, p:], x[:, :, :-p])
    seam2 = sqsum(x[:, :, H // 2:H // 2 + p], x[:, :, H // 2 - p:H // 2])
    wrap2 = sqsum(x[:, :, :p], x[:, :, H - p:])
    s2_shift = s2 - seam2 + wrap2

    # Pack the four scalars lane-wise into one vreg row (tiny; single vreg).
    lane = lax.broadcasted_iota(jnp.int32, o_ref.shape, 1)
    vals = (jnp.where(lane == 0, s1, 0.0)
            + jnp.where(lane == 1, s2, 0.0)
            + jnp.where(lane == 2, s1_shift, 0.0)
            + jnp.where(lane == 3, s2_shift, 0.0))

    @pl.when(pl.program_id(2) == 0)
    def _():
        o_ref[...] = jnp.zeros_like(o_ref)

    o_ref[...] += vals


def _choose_c_tiling(C, W, H, itemsize, budget_bytes=_BLOCK_BUDGET_BYTES):
    """Returns (c_tile, C_padded).  Pads C with zero channels when C has no
    divisor close to the VMEM budget (zero channels contribute 0 to all sums)."""
    max_c = max(1, budget_bytes // (W * H * itemsize))
    max_c = min(max_c, C)
    best = 1
    for d in range(1, max_c + 1):
        if C % d == 0:
            best = d
    if best == C or 2 * best >= max_c:
        return best, C                     # good divisor; no padding needed
    c_tile = max_c
    c_pad = -(-C // c_tile) * c_tile
    return c_tile, c_pad


# --------------------------------------------------------------------------
# Pallas wrapper
# --------------------------------------------------------------------------
def _tv_sums(x, patch, c_tile=None, n_split=None):
    """Run the kernel; returns [B, 4] f32 sums (s1, s2, s1_shift, s2_shift)."""
    B, C, W, H = x.shape
    itemsize = jnp.dtype(x.dtype).itemsize

    if c_tile is None:
        c_tile, c_pad = _choose_c_tiling(C, W, H, itemsize)
    else:
        c_pad = -(-C // c_tile) * c_tile
    if c_pad != C:
        # Zero channels add exactly 0 to every (squared-diff) sum.
        x = jnp.pad(x, ((0, 0), (0, c_pad - C), (0, 0), (0, 0)))
    nc = c_pad // c_tile

    # Small-batch megacore help (v7x has 2 TCs): split the C axis in parallel.
    if n_split is None:
        n_split = 2 if (B == 1 and nc >= 2 and nc % 2 == 0) else 1
    assert nc % n_split == 0, (nc, n_split)
    nc_inner = nc // n_split

    out = pl.pallas_call(
        functools.partial(_rtv_sums_kernel, patch),
        grid=(B, n_split, nc_inner),
        in_specs=[
            pl.BlockSpec((None, c_tile, W, H),
                         lambda b, s, c: (b, s * nc_inner + c, 0, 0)),
        ],
        out_specs=pl.BlockSpec((None, None, 1, _LANES),
                               lambda b, s, c: (b, s, 0, 0)),
        out_shape=jax.ShapeDtypeStruct((B, n_split, 1, _LANES), jnp.float32),
        compiler_params=pltpu.CompilerParams(
            dimension_semantics=("parallel", "parallel", "arbitrary"),
            vmem_limit_bytes=_VMEM_LIMIT_BYTES),
    )(x)
    # Reduce the parallel split in the epilogue; keep only the 4 real lanes.
    return out[:, :, 0, :4].sum(axis=1)    # (B, 4)


# --------------------------------------------------------------------------
# Forward pass (matches RelativeTV.forward)
# --------------------------------------------------------------------------
def relative_tv(data, *, eps=EPS, reduction="mean", patch=PATCH,
                c_tile=None, n_split=None):
    assert data.ndim == 4, f"expected [B, C, W, H], got {data.shape}"
    B, C, W, H = data.shape
    assert W % patch == 0 and H % patch == 0, (W, H, patch)
    # Seam-correction identity needs >= 2 patches per spatial axis (W == patch
    # is degenerate: the PyTorch reference divides by zero / returns NaN).
    assert W >= 2 * patch and H >= 2 * patch, (W, H, patch)

    sums = _tv_sums(data, patch, c_tile=c_tile, n_split=n_split)   # (B, 4)
    s1, s2, s1s, s2s = sums[:, 0], sums[:, 1], sums[:, 2], sums[:, 3]

    n1 = float(C * (W - patch) * H)        # elem count of diff1 (per batch)
    n2 = float(C * W * (H - patch))        # elem count of diff2 (per batch)

    tv_b = jnp.sqrt(s1 / n1 + s2 / n2)     # original image, [B]
    tv_a = jnp.sqrt(s1s / n1 + s2s / n2)   # half-period shifted image, [B]

    if reduction == "mean":
        tv_b, tv_a = tv_b.mean(), tv_a.mean()
    elif reduction == "sum":
        tv_b, tv_a = tv_b.sum(), tv_a.sum()
    # 'none' keeps [B]

    rel_ab = jnp.abs(1.0 - tv_a / (tv_b + eps))
    rel_ba = jnp.abs(1.0 - tv_b / (tv_a + eps))
    return 0.5 * rel_ab + 0.5 * rel_ba


# --------------------------------------------------------------------------
# Pure-JAX reference (mirrors the PyTorch code literally) for verification
# --------------------------------------------------------------------------
def _tv_loss_ref(img, patch, reduction):
    b, c, w, h = img.shape
    x = img.reshape(b, c, w // patch, patch, h // patch, patch)
    d1 = x[:, :, 1:, :, :, :] - x[:, :, :-1, :, :, :]
    d2 = x[:, :, :, :, 1:, :] - x[:, :, :, :, :-1, :]
    r1 = jnp.mean(d1 * d1, axis=(1, 2, 3, 4, 5))
    r2 = jnp.mean(d2 * d2, axis=(1, 2, 3, 4, 5))
    score = jnp.sqrt(r1 + r2)
    if reduction == "mean":
        return score.mean()
    if reduction == "sum":
        return score.sum()
    return score


def relative_tv_ref(data, *, eps=EPS, reduction="mean", patch=PATCH):
    b, c, w, h = data.shape
    tv_b = _tv_loss_ref(data, patch, reduction)
    rep = jnp.tile(data, (1, 1, 2, 2))
    shifted = rep[:, :, w // 2: w // 2 + w, h // 2: h // 2 + h]
    tv_a = _tv_loss_ref(shifted, patch, reduction)
    rel_ab = jnp.abs(1.0 - tv_a / (tv_b + eps))
    rel_ba = jnp.abs(1.0 - tv_b / (tv_a + eps))
    return 0.5 * rel_ab + 0.5 * rel_ba


if __name__ == "__main__":
    key = jax.random.PRNGKey(0)

    # (shape, reduction, forced c_tile) — configs exercise: single-chunk path,
    # multi-chunk accumulation, B=1 parallel C split, and zero-channel padding.
    configs = [
        ((2, 4, 16, 16), "mean", None),
        ((2, 3, 32, 48), "none", None),
        ((2, 4, 16, 16), "sum", 2),    # multi C-chunk accumulation (pl.when init)
        ((1, 6, 16, 16), "mean", 1),   # B=1 -> parallel C split (n_split=2)
        ((2, 5, 16, 16), "none", 2),   # C=5 padded to 6 with a zero channel
    ]

    for shape, red, ct in configs:
        key, sub = jax.random.split(key)
        x = jax.random.normal(sub, shape, dtype=jnp.float32)
        out = jax.block_until_ready(
            relative_tv(x, eps=EPS, reduction=red, patch=PATCH, c_tile=ct))
        ref = relative_tv_ref(x, eps=EPS, reduction=red, patch=PATCH)
        assert jnp.allclose(out, ref, rtol=1e-4, atol=5e-5), (shape, red, out, ref)

    print("KERNEL_OK")
</pallas_src>

<mosaic_0001>
module attributes {stable_mosaic.version = 11 : i64} {
  func.func @_rtv_sums_kernel(%arg0: i32, %arg1: i32, %arg2: i32, %arg3: memref<1x4x16x16xf32, #tpu.memory_space<vmem>>, %arg4: memref<1x1x1x128xf32, #tpu.memory_space<vmem>>) attributes {dimension_semantics = [#tpu.dimension_semantics<parallel>, #tpu.dimension_semantics<parallel>, #tpu.dimension_semantics<arbitrary>], iteration_bounds = array<i64: 2, 1, 1>, scalar_prefetch = 0 : i64, scratch_operands = 0 : i64, tpu.core_type = #tpu.core_type<tc>, window_params = [{transform_indices = @transform_0, window_bounds = array<i64: 1, 4, 16, 16>}, {transform_indices = @transform_1, window_bounds = array<i64: 1, 1, 1, 128>}]} {
    %c0 = arith.constant 0 : index
    %c0_0 = arith.constant 0 : index
    %c0_1 = arith.constant 0 : index
    %c0_2 = arith.constant 0 : index
    %0 = vector.load %arg3[%c0, %c0_0, %c0_1, %c0_2] : memref<1x4x16x16xf32, #tpu.memory_space<vmem>>, vector<1x4x16x16xf32>
    %1 = vector.shape_cast %0 : vector<1x4x16x16xf32> to vector<4x16x16xf32>
    %2 = vector.extract_strided_slice %1 {offsets = [0, 8, 0], sizes = [4, 8, 16], strides = [1, 1, 1]} : vector<4x16x16xf32> to vector<4x8x16xf32>
    %3 = vector.extract_strided_slice %1 {offsets = [0, 0, 0], sizes = [4, 8, 16], strides = [1, 1, 1]} : vector<4x16x16xf32> to vector<4x8x16xf32>
    %4 = arith.subf %2, %3 : vector<4x8x16xf32>
    %5 = arith.mulf %4, %4 : vector<4x8x16xf32>
    %6 = vector.shape_cast %5 : vector<4x8x16xf32> to vector<1x4x8x16xf32>
    %cst = arith.constant dense<0.000000e+00> : vector<1xf32>
    %7 = vector.multi_reduction <add>, %6, %cst [1, 2, 3] : vector<1x4x8x16xf32> to vector<1xf32>
    %8 = vector.shape_cast %7 : vector<1xf32> to vector<1x1x1x1xf32>
    %9 = vector.extract %8[0, 0, 0, 0] : f32 from vector<1x1x1x1xf32>
    %10 = vector.extract_strided_slice %1 {offsets = [0, 8, 0], sizes = [4, 8, 16], strides = [1, 1, 1]} : vector<4x16x16xf32> to vector<4x8x16xf32>
    %11 = vector.extract_strided_slice %1 {offsets = [0, 0, 0], sizes = [4, 8, 16], strides = [1, 1, 1]} : vector<4x16x16xf32> to vector<4x8x16xf32>
    %12 = arith.subf %10, %11 : vector<4x8x16xf32>
    %13 = arith.mulf %12, %12 : vector<4x8x16xf32>
    %14 = vector.shape_cast %13 : vector<4x8x16xf32> to vector<1x4x8x16xf32>
    %cst_3 = arith.constant dense<0.000000e+00> : vector<1xf32>
    %15 = vector.multi_reduction <add>, %14, %cst_3 [1, 2, 3] : vector<1x4x8x16xf32> to vector<1xf32>
    %16 = vector.shape_cast %15 : vector<1xf32> to vector<1x1x1x1xf32>
    %17 = vector.extract %16[0, 0, 0, 0] : f32 from vector<1x1x1x1xf32>
    %18 = vector.extract_strided_slice %1 {offsets = [0, 0, 0], sizes = [4, 8, 16], strides = [1, 1, 1]} : vector<4x16x16xf32> to vector<4x8x16xf32>
    %19 = vector.extract_strided_slice %1 {offsets = [0, 8, 0], sizes = [4, 8, 16], strides = [1, 1, 1]} : vector<4x16x16xf32> to vector<4x8x16xf32>
    %20 = arith.subf %18, %19 : vector<4x8x16xf32>
    %21 = arith.mulf %20, %20 : vector<4x8x16xf32>
    %22 = vector.shape_cast %21 : vector<4x8x16xf32> to vector<1x4x8x16xf32>
    %cst_4 = arith.constant dense<0.000000e+00> : vector<1xf32>
    %23 = vector.multi_reduction <add>, %22, %cst_4 [1, 2, 3] : vector<1x4x8x16xf32> to vector<1xf32>
    %24 = vector.shape_cast %23 : vector<1xf32> to vector<1x1x1x1xf32>
    %25 = vector.extract %24[0, 0, 0, 0] : f32 from vector<1x1x1x1xf32>
    %26 = arith.subf %9, %17 : f32
    %27 = arith.addf %26, %25 : f32
    %28 = vector.extract_strided_slice %1 {offsets = [0, 0, 8], sizes = [4, 16, 8], strides = [1, 1, 1]} : vector<4x16x16xf32> to vector<4x16x8xf32>
    %29 = vector.extract_strided_slice %1 {offsets = [0, 0, 0], sizes = [4, 16, 8], strides = [1, 1, 1]} : vector<4x16x16xf32> to vector<4x16x8xf32>
    %30 = arith.subf %28, %29 : vector<4x16x8xf32>
    %31 = arith.mulf %30, %30 : vector<4x16x8xf32>
    %32 = vector.shape_cast %31 : vector<4x16x8xf32> to vector<1x4x16x8xf32>
    %cst_5 = arith.constant dense<0.000000e+00> : vector<1xf32>
    %33 = vector.multi_reduction <add>, %32, %cst_5 [1, 2, 3] : vector<1x4x16x8xf32> to vector<1xf32>
    %34 = vector.shape_cast %33 : vector<1xf32> to vector<1x1x1x1xf32>
    %35 = vector.extract %34[0, 0, 0, 0] : f32 from vector<1x1x1x1xf32>
    %36 = vector.extract_strided_slice %1 {offsets = [0, 0, 8], sizes = [4, 16, 8], strides = [1, 1, 1]} : vector<4x16x16xf32> to vector<4x16x8xf32>
    %37 = vector.extract_strided_slice %1 {offsets = [0, 0, 0], sizes = [4, 16, 8], strides = [1, 1, 1]} : vector<4x16x16xf32> to vector<4x16x8xf32>
    %38 = arith.subf %36, %37 : vector<4x16x8xf32>
    %39 = arith.mulf %38, %38 : vector<4x16x8xf32>
    %40 = vector.shape_cast %39 : vector<4x16x8xf32> to vector<1x4x16x8xf32>
    %cst_6 = arith.constant dense<0.000000e+00> : vector<1xf32>
    %41 = vector.multi_reduction <add>, %40, %cst_6 [1, 2, 3] : vector<1x4x16x8xf32> to vector<1xf32>
    %42 = vector.shape_cast %41 : vector<1xf32> to vector<1x1x1x1xf32>
    %43 = vector.extract %42[0, 0, 0, 0] : f32 from vector<1x1x1x1xf32>
    %44 = vector.extract_strided_slice %1 {offsets = [0, 0, 0], sizes = [4, 16, 8], strides = [1, 1, 1]} : vector<4x16x16xf32> to vector<4x16x8xf32>
    %45 = vector.extract_strided_slice %1 {offsets = [0, 0, 8], sizes = [4, 16, 8], strides = [1, 1, 1]} : vector<4x16x16xf32> to vector<4x16x8xf32>
    %46 = arith.subf %44, %45 : vector<4x16x8xf32>
    %47 = arith.mulf %46, %46 : vector<4x16x8xf32>
    %48 = vector.shape_cast %47 : vector<4x16x8xf32> to vector<1x4x16x8xf32>
    %cst_7 = arith.constant dense<0.000000e+00> : vector<1xf32>
    %49 = vector.multi_reduction <add>, %48, %cst_7 [1, 2, 3] : vector<1x4x16x8xf32> to vector<1xf32>
    %50 = vector.shape_cast %49 : vector<1xf32> to vector<1x1x1x1xf32>
    %51 = vector.extract %50[0, 0, 0, 0] : f32 from vector<1x1x1x1xf32>
    %52 = arith.subf %35, %43 : f32
    %53 = arith.addf %52, %51 : f32
    %54 = tpu.iota {dimensions = array<i32: 1>} : vector<1x128xi32>
    %c0_i32 = arith.constant 0 : i32
    %55 = vector.broadcast %c0_i32 : i32 to vector<1x128xi32>
    %56 = arith.cmpi eq, %54, %55 : vector<1x128xi32>
    %cst_8 = arith.constant 0.000000e+00 : f32
    %57 = vector.broadcast %9 : f32 to vector<1x128xf32>
    %58 = vector.broadcast %cst_8 : f32 to vector<1x128xf32>
    %59 = arith.select %56, %57, %58 : vector<1x128xi1>, vector<1x128xf32>
    %c1_i32 = arith.constant 1 : i32
    %60 = vector.broadcast %c1_i32 : i32 to vector<1x128xi32>
    %61 = arith.cmpi eq, %54, %60 : vector<1x128xi32>
    %cst_9 = arith.constant 0.000000e+00 : f32
    %62 = vector.broadcast %35 : f32 to vector<1x128xf32>
    %63 = vector.broadcast %cst_9 : f32 to vector<1x128xf32>
    %64 = arith.select %61, %62, %63 : vector<1x128xi1>, vector<1x128xf32>
    %65 = arith.addf %59, %64 : vector<1x128xf32>
    %c2_i32 = arith.constant 2 : i32
    %66 = vector.broadcast %c2_i32 : i32 to vector<1x128xi32>
    %67 = arith.cmpi eq, %54, %66 : vector<1x128xi32>
    %cst_10 = arith.constant 0.000000e+00 : f32
    %68 = vector.broadcast %27 : f32 to vector<1x128xf32>
    %69 = vector.broadcast %cst_10 : f32 to vector<1x128xf32>
    %70 = arith.select %67, %68, %69 : vector<1x128xi1>, vector<1x128xf32>
    %71 = arith.addf %65, %70 : vector<1x128xf32>
    %c3_i32 = arith.constant 3 : i32
    %72 = vector.broadcast %c3_i32 : i32 to vector<1x128xi32>
    %73 = arith.cmpi eq, %54, %72 : vector<1x128xi32>
    %cst_11 = arith.constant 0.000000e+00 : f32
    %74 = vector.broadcast %53 : f32 to vector<1x128xf32>
    %75 = vector.broadcast %cst_11 : f32 to vector<1x128xf32>
    %76 = arith.select %73, %74, %75 : vector<1x128xi1>, vector<1x128xf32>
    %77 = arith.addf %71, %76 : vector<1x128xf32>
    %c0_i32_12 = arith.constant 0 : i32
    %78 = arith.cmpi eq, %arg2, %c0_i32_12 : i32
    %79 = arith.extui %78 : i1 to i32
    %c0_i32_13 = arith.constant 0 : i32
    %80 = arith.cmpi ne, %79, %c0_i32_13 : i32
    scf.if %80 {
      %cst_22 = arith.constant 0.000000e+00 : f32
      %87 = vector.broadcast %cst_22 : f32 to vector<1x128xf32>
      %c0_23 = arith.constant 0 : index
      %c0_24 = arith.constant 0 : index
      %c0_25 = arith.constant 0 : index
      %c0_26 = arith.constant 0 : index
      %88 = vector.load %arg4[%c0_23, %c0_24, %c0_25, %c0_26] : memref<1x1x1x128xf32, #tpu.memory_space<vmem>>, vector<1x1x1x128xf32>
      %89 = vector.shape_cast %88 : vector<1x1x1x128xf32> to vector<1x128xf32>
      %90 = vector.shape_cast %87 : vector<1x128xf32> to vector<1x1x1x128xf32>
      tpu.vector_store %arg4[%c0_23, %c0_24, %c0_25, %c0_26], %90 {strides = array<i32>} : memref<1x1x1x128xf32, #tpu.memory_space<vmem>>, vector<1x1x1x128xf32>,
    } else {
    }
    %c0_14 = arith.constant 0 : index
    %c0_15 = arith.constant 0 : index
    %c0_16 = arith.constant 0 : index
    %c0_17 = arith.constant 0 : index
    %81 = vector.load %arg4[%c0_14, %c0_15, %c0_16, %c0_17] : memref<1x1x1x128xf32, #tpu.memory_space<vmem>>, vector<1x1x1x128xf32>
    %82 = vector.shape_cast %81 : vector<1x1x1x128xf32> to vector<1x128xf32>
    %83 = arith.addf %82, %77 : vector<1x128xf32>
    %c0_18 = arith.constant 0 : index
    %c0_19 = arith.constant 0 : index
    %c0_20 = arith.constant 0 : index
    %c0_21 = arith.constant 0 : index
    %84 = vector.load %arg4[%c0_18, %c0_19, %c0_20, %c0_21] : memref<1x1x1x128xf32, #tpu.memory_space<vmem>>, vector<1x1x1x128xf32>
    %85 = vector.shape_cast %84 : vector<1x1x1x128xf32> to vector<1x128xf32>
    %86 = vector.shape_cast %83 : vector<1x128xf32> to vector<1x1x1x128xf32>
    tpu.vector_store %arg4[%c0_18, %c0_19, %c0_20, %c0_21], %86 {strides = array<i32>} : memref<1x1x1x128xf32, #tpu.memory_space<vmem>>, vector<1x1x1x128xf32>,
    return
  }
  func.func @transform_0(%arg0: i32, %arg1: i32, %arg2: i32) -> (i32, i32, i32, i32) {
    %c1_i32 = arith.constant 1 : i32
    %0 = arith.muli %arg1, %c1_i32 : i32
    %1 = arith.addi %0, %arg2 : i32
    %c0_i32 = arith.constant 0 : i32
    %c0_i32_0 = arith.constant 0 : i32
    %c0_i32_1 = arith.constant 0 : i32
    return %arg0, %1, %c0_i32, %c0_i32_0 : i32, i32, i32, i32
  }
  func.func @transform_1(%arg0: i32, %arg1: i32, %arg2: i32) -> (i32, i32, i32, i32) {
    %c0_i32 = arith.constant 0 : i32
    %c0_i32_0 = arith.constant 0 : i32
    %c0_i32_1 = arith.constant 0 : i32
    return %arg0, %arg1, %c0_i32, %c0_i32_0 : i32, i32, i32, i32
  }
}

</mosaic_0001>

<llo_original>
// kernel: tpu_custom_call.1
$region0: #{tpu_custom_call.1}
  #allocation0 [shape = 'u32[]', space=smem, size = 0x4, offset = 0x4, fixed_abs, tag = 'smem constant byte address 0x4 - core index']
  #allocation1 [shape = 'u32[144,128]{1,0:T(1,128)}', space=vmem, size = 0x12000, scoped, tag = 'internal scratch']
  %s0 = inlined_call_operand.hbm [shape: f32[2,4,16,16], index: 0, kind: input, shape index: {}]
  %s1 = inlined_call_operand.hbm [shape: f32[2,1,1,128], index: 1, kind: output, shape index: {}]
  %s2 = sld [smem:[#allocation0]]
  $region45: #{tpu_custom_call.1} parent=0
    _
  %s4 = ssub.s32 1, %s2
  %s5 = scalar_select 0, %s4, %s2
  $region1: #{tpu_custom_call.1} parent=0
    #allocation2 [shape = 'u8[65536]{0}', space=vmem, size = 0x10000, scoped, tag = 'input window, operand 0']
    #allocation3 [shape = 's32[2]{0}', space=sflag, size = 0x8, scoped, tag = 'scoped memory for tpu_custom_call.1']
    #allocation4 [shape = 's32[2]{0}', space=sflag, size = 0x8, scoped, tag = 'scoped memory for tpu_custom_call.1']
    #allocation5 [shape = 'u8[1024]{0}', space=vmem, size = 0x400, scoped, tag = 'output window, operand 0']
    %6 = vsyncpa [#allocation3], 0
    %s7 = scalar_lea.sflag [#allocation3], 1
    %8 = vsyncpa %s7, 0
    %9 = vsyncpa [#allocation4], 0
    %s10 = scalar_lea.sflag [#allocation4], 1
    %11 = vsyncpa %s10, 0
    loop: start=0, step=1, limit=4
    $region2: #{tpu_custom_call.1} parent=1 // loop_pre_header
      _
    $region3: #{tpu_custom_call.1} parent=1 // loop_header
      %s13 = sphi 0, %s17
      %p14 = scmp.ge.s32.totalorder %s13, 4
      %s20 = sphi 0, %s39
      %s21 = sphi 0, %s35
      %s22 = sphi 0, %s31
      %s23 = sphi 0, %s20
      %s24 = sphi 0, %s21
      %s25 = sphi 0, %s22
      %s26 = sphi 0, %s23
      %s27 = sphi 0, %s24
      %s28 = sphi 0, %s25
      %s46 = sphi 0, %s48
      %s49 = sphi 0, %s46
      %s50 = sphi 0, %s49
      %s66 = sphi 0, %s50
      %s74 = sphi 0, %s76
      %s77 = sphi 0, %s74
      %s78 = sphi 0, %s77
      %s94 = sphi 0, %s78
    $region4: #{tpu_custom_call.1} parent=1 // loop_header_branch
      %16 = sbr.rel (%p14) target = $region8
    $region5: #{tpu_custom_call.1} parent=1 // loop_body
      %s18 = ssub.s32 %s13, 1
      %s19 = ssub.s32 %s13, 2
      %s29 = sadd.s32 1, %s22
      %p30 = scmp.ge.s32.totalorder %s29, 1
      %s31 = scalar_select %p30, 0, %s29
      %s32 = sadd.s32 1, %s21
      %s33 = scalar_select %p30, %s32, %s21
      %p34 = scmp.ge.s32.totalorder %s33, 1
      %s35 = scalar_select %p34, 0, %s33
      %s36 = sadd.s32 1, %s20
      %s37 = scalar_select %p34, %s36, %s20
      %p38 = scmp.ge.s32.totalorder %s37, 2
      %s39 = scalar_select %p38, 0, %s37
      %s40 = sadd.s32 %s21, %s22
      %s41 = sadd.s32 %s35, %s31
      %s42 = ssub.s32 %s20, %s39
      %s43 = ssub.s32 %s40, %s41
      %s44 = sor.u32 %s42, %s43
      %p45 = scmp.eq.s32.totalorder %s44, 0
      %s47 = sadd.s32 %s46, 1
      %s48 = scalar_select %p45, %s46, %s47
      %p51 = pneg %p45
      %p52 = scmp.eq.s32.totalorder %s13, 1
      %p53 = por %p51, %p52
      %p54 = scmp.ne.s32.totalorder %s46, %s49
      %p55 = scmp.eq.s32.totalorder %s13, 0
      %p56 = por %p54, %p55
      %p57 = scmp.ne.s32.totalorder %s46, %s49
      %p58 = scmp.eq.s32.totalorder %s18, 1
      %p59 = por %p57, %p58
      %p60 = scmp.ne.s32.totalorder %s49, %s50
      %p61 = scmp.eq.s32.totalorder %s18, 0
      %p62 = por %p60, %p61
      %p63 = scmp.ne.s32.totalorder %s49, %s50
      %p64 = scmp.eq.s32.totalorder %s19, 1
      %p65 = por %p63, %p64
      %p67 = scmp.ne.s32.totalorder %s50, %s66
      %p68 = scmp.eq.s32.totalorder %s19, 0
      %p69 = por %p67, %p68
      %s70 = ssub.s32 %s20, %s39
      %s71 = ssub.s32 %s21, %s35
      %s72 = sor.u32 %s70, %s71
      %p73 = scmp.eq.s32.totalorder %s72, 0
      %s75 = sadd.s32 %s74, 1
      %s76 = scalar_select %p73, %s74, %s75
      %p79 = pneg %p73
      %p80 = scmp.eq.s32.totalorder %s13, 1
      %p81 = por %p79, %p80
      %p82 = scmp.ne.s32.totalorder %s74, %s77
      %p83 = scmp.eq.s32.totalorder %s13, 0
      %p84 = por %p82, %p83
      %p85 = scmp.ne.s32.totalorder %s74, %s77
      %p86 = scmp.eq.s32.totalorder %s18, 1
      %p87 = por %p85, %p86
      %p88 = scmp.ne.s32.totalorder %s77, %s78
      %p89 = scmp.eq.s32.totalorder %s18, 0
      %p90 = por %p88, %p89
      %p91 = scmp.ne.s32.totalorder %s77, %s78
      %p92 = scmp.eq.s32.totalorder %s19, 1
      %p93 = por %p91, %p92
      %p95 = scmp.ne.s32.totalorder %s78, %s94
      %p96 = scmp.eq.s32.totalorder %s19, 0
      %p97 = por %p95, %p96
      %p98 = scmp.le.s32.totalorder 1, %s13
      %p99 = scmp.lt.s32.totalorder %s13, 3
      %p100 = pnand %p98, %p99
      %p101 = pneg %p100
      // Predicated region
      $region9: #{tpu_custom_call.1} parent=5 // pred_check
        _
      $region10: #{tpu_custom_call.1} parent=5 // pred_check_branch
        %103 = sbr.rel (%p100) target = $region12
      $region11: #{tpu_custom_call.1} parent=5 // pred_region
        %s104 = ssub.s32 %s13, 1
      $region12: #{tpu_custom_call.1} parent=5 // pred_fallthru
        _
      %p105 = scmp.lt.s32.totalorder %s13, 2
      // Predicated region
      $region13: #{tpu_custom_call.1} parent=5 // pred_check
        %p106 = pneg %p105
      $region14: #{tpu_custom_call.1} parent=5 // pred_check_branch
        %108 = sbr.rel (%p106) target = $region16
      $region15: #{tpu_custom_call.1} parent=5 // pred_region
        // Predicated region
        $region17: #{tpu_custom_call.1} parent=15 // pred_check
          %p109 = pneg %p56
        $region18: #{tpu_custom_call.1} parent=15 // pred_check_branch
          %111 = sbr.rel (%p109) target = $region20
        $region19: #{tpu_custom_call.1} parent=15 // pred_region
          %s112 = sand.u32 %s46, 1
          %s113 = scalar_lea.sflag [#allocation3], %s112
          %s114 = sand.u32 %s46, 1
          %s115 = smul.addr %s114, 64
          %s116 = scalar_lea.vmem [#allocation2], %s115
          %s117 = sadd.s32 %s21, %s22
          %s118 = smul.u32 4, %s117
          %s120 = ssub.s32 1024, 1024
          %121 = vsyncadd %s113, %s120
          %s122 = smul.addr %s118, 2
          %s123 = smul.addr %s20, 8
          %s124 = sadd.s32 %s122, %s123
          %s125 = smul.addr %s124, 128
          %s126 = scalar_lea.hbm %s0, %s125
          %s127 = sshll.u32 %s116, 4
          %s128 = int_to_ptr.vmem [resolvable:$true] %s127
          %133 = dma.hbm_to_vmem [thread:$0]  %s126, 1024, %s128, %s113, 128, 128, 8
        $region20: #{tpu_custom_call.1} parent=15 // pred_fallthru
          _
      $region16: #{tpu_custom_call.1} parent=5 // pred_fallthru
        _
      %p134 = scmp.le.s32.totalorder 1, %s13
      %p135 = scmp.lt.s32.totalorder %s13, 3
      %p136 = pnand %p134, %p135
      %p137 = pneg %p136
      // Predicated region
      $region21: #{tpu_custom_call.1} parent=5 // pred_check
        _
      $region22: #{tpu_custom_call.1} parent=5 // pred_check_branch
        %139 = sbr.rel (%p136) target = $region24
      $region23: #{tpu_custom_call.1} parent=5 // pred_region
        %s140 = ssub.s32 %s13, 1
        %s141 = sand.u32 %s49, 1
        %s142 = scalar_lea.sflag [#allocation3], %s141
        %s143 = sand.u32 %s49, 1
        %s144 = smul.addr %s143, 64
        %s145 = scalar_lea.vmem [#allocation2], %s144
        // Predicated region
        $region25: #{tpu_custom_call.1} parent=23 // pred_check
          %p146 = pneg %p62
        $region26: #{tpu_custom_call.1} parent=23 // pred_check_branch
          %148 = sbr.rel (%p146) target = $region28
        $region27: #{tpu_custom_call.1} parent=23 // pred_region
          %149 = dma.done %s142, 1024
        $region28: #{tpu_custom_call.1} parent=23 // pred_fallthru
          _
        %s150 = sand.u32 %s49, 1
        %s151 = scalar_lea.sflag [#allocation3], %s150
        %s152 = sand.u32 %s49, 1
        %s153 = smul.addr %s152, 64
        %s154 = scalar_lea.vmem [#allocation2], %s153
        %p155 = pneg %p62
        %p156 = pneg %p59
        %p157 = pneg %p90
        %p158 = pneg %p87
        %s159 = sand.u32 %s77, 1
        %s160 = scalar_lea.sflag [#allocation4], %s159
        %s161 = sand.u32 %s77, 1
        %s162 = scalar_lea.vmem [#allocation5], %s161
        %s163 = sadd.s32 %s24, %s25
        %s164 = smul.u32 4, %s163
        %v165 = vld [vmem:[%s145] sm:$0xff]
        %v166 = vld [vmem:[%s145 + $0x8] sm:$0xff]
        %v167 = vld [vmem:[%s145 + $0x10] sm:$0xff]
        %v168 = vld [vmem:[%s145 + $0x18] sm:$0xff]
        %v169 = vld [vmem:[%s145 + $0x20] sm:$0xff]
        %v170 = vld [vmem:[%s145 + $0x28] sm:$0xff]
        %v171 = vld [vmem:[%s145 + $0x30] sm:$0xff]
        %v172 = vld [vmem:[%s145 + $0x38] sm:$0xff]
        %v173 = vsub.f32 %v166, %v165
        %v174 = vsub.f32 %v168, %v167
        %v175 = vsub.f32 %v170, %v169
        %v176 = vsub.f32 %v172, %v171
        %v177 = vmul.f32 %v173, %v173
        %v178 = vmul.f32 %v174, %v174
        %v179 = vmul.f32 %v175, %v175
        %v180 = vmul.f32 %v176, %v176
        %vm181 = vcmask 130048
        %v182 = vsel %vm181, %v177, 0.0
        %v183 = vsel %vm181, %v178, 0.0
        %v184 = vadd.f32 %v182, %v183
        %v185 = vsel %vm181, %v179, 0.0
        %v186 = vadd.f32 %v184, %v185
        %v187 = vsel %vm181, %v180, 0.0
        %v188 = vadd.f32 %v186, %v187
        %189 = vadd.xlane.f32.xlu0 %v188
        %v190 = vpop.xlane.xlu0 %189
        %v191 = vrot.slane %v190, 4
        %v192 = vadd.f32 %v190, %v191
        %v193 = vrot.slane %v192, 2
        %v194 = vadd.f32 %v192, %v193
        %v195 = vrot.slane %v194, 1
        %v196 = vadd.f32 %v194, %v195
        %s197 = vtos %v196
        %v198 = vsub.f32 %v165, %v166
        %v199 = vsub.f32 %v167, %v168
        %v200 = vsub.f32 %v169, %v170
        %v201 = vsub.f32 %v171, %v172
        %v202 = vmul.f32 %v198, %v198
        %v203 = vmul.f32 %v199, %v199
        %v204 = vmul.f32 %v200, %v200
        %v205 = vmul.f32 %v201, %v201
        %v206 = vsel %vm181, %v202, 0.0
        %v207 = vsel %vm181, %v203, 0.0
        %v208 = vadd.f32 %v206, %v207
        %v209 = vsel %vm181, %v204, 0.0
        %v210 = vadd.f32 %v208, %v209
        %v211 = vsel %vm181, %v205, 0.0
        %v212 = vadd.f32 %v210, %v211
        %213 = vadd.xlane.f32.xlu0 %v212
        %v214 = vpop.xlane.xlu0 %213
        %v215 = vrot.slane %v214, 4
        %v216 = vadd.f32 %v214, %v215
        %v217 = vrot.slane %v216, 2
        %v218 = vadd.f32 %v216, %v217
        %v219 = vrot.slane %v218, 1
        %v220 = vadd.f32 %v218, %v219
        %s221 = vtos %v220
        %s222 = ssub.f32 %s197, %s197
        %s223 = sadd.f32 %s222, %s221
        %232 = vrot.lane.b32.xlu0 %v165, 8
        %v233 = vpop.permute.xlu0 %232
        %234 = vrot.lane.b32.xlu0 %v166, 8
        %v235 = vpop.permute.xlu0 %234
        %236 = vrot.lane.b32.xlu0 %v167, 8
        %v237 = vpop.permute.xlu0 %236
        %238 = vrot.lane.b32.xlu0 %v168, 8
        %v239 = vpop.permute.xlu0 %238
        %240 = vrot.lane.b32.xlu0 %v169, 8
        %v241 = vpop.permute.xlu0 %240
        %242 = vrot.lane.b32.xlu0 %v170, 8
        %v243 = vpop.permute.xlu0 %242
        %244 = vrot.lane.b32.xlu0 %v171, 8
        %v245 = vpop.permute.xlu0 %244
        %246 = vrot.lane.b32.xlu0 %v172, 8
        %v247 = vpop.permute.xlu0 %246
        %v256 = vsub.f32 %v165, %v233
        %v257 = vsub.f32 %v166, %v235
        %v258 = vsub.f32 %v167, %v237
        %v259 = vsub.f32 %v168, %v239
        %v260 = vsub.f32 %v169, %v241
        %v261 = vsub.f32 %v170, %v243
        %v262 = vsub.f32 %v171, %v245
        %v263 = vsub.f32 %v172, %v247
        %v264 = vmul.f32 %v256, %v256
        %v265 = vmul.f32 %v257, %v257
        %v266 = vmul.f32 %v258, %v258
        %v267 = vmul.f32 %v259, %v259
        %v268 = vmul.f32 %v260, %v260
        %v269 = vmul.f32 %v261, %v261
        %v270 = vmul.f32 %v262, %v262
        %v271 = vmul.f32 %v263, %v263
        %280 = vrot.lane.b32.xlu0 %v264, 120
        %v281 = vpop.permute.xlu0 %280
        %282 = vrot.lane.b32.xlu0 %v265, 120
        %v283 = vpop.permute.xlu0 %282
        %284 = vrot.lane.b32.xlu0 %v266, 120
        %v285 = vpop.permute.xlu0 %284
        %286 = vrot.lane.b32.xlu0 %v267, 120
        %v287 = vpop.permute.xlu0 %286
        %288 = vrot.lane.b32.xlu0 %v268, 120
        %v289 = vpop.permute.xlu0 %288
        %290 = vrot.lane.b32.xlu0 %v269, 120
        %v291 = vpop.permute.xlu0 %290
        %292 = vrot.lane.b32.xlu0 %v270, 120
        %v293 = vpop.permute.xlu0 %292
        %294 = vrot.lane.b32.xlu0 %v271, 120
        %v295 = vpop.permute.xlu0 %294
        %vm304 = vcmask 64512
        %v305 = vsel %vm304, %v281, 0.0
        %v306 = vsel %vm304, %v283, 0.0
        %v307 = vadd.f32 %v305, %v306
        %v308 = vsel %vm304, %v285, 0.0
        %v309 = vadd.f32 %v307, %v308
        %v310 = vsel %vm304, %v287, 0.0
        %v311 = vadd.f32 %v309, %v310
        %v312 = vsel %vm304, %v289, 0.0
        %v313 = vadd.f32 %v311, %v312
        %v314 = vsel %vm304, %v291, 0.0
        %v315 = vadd.f32 %v313, %v314
        %v316 = vsel %vm304, %v293, 0.0
        %v317 = vadd.f32 %v315, %v316
        %v318 = vsel %vm304, %v295, 0.0
        %v319 = vadd.f32 %v317, %v318
        %320 = vadd.xlane.f32.xlu0 %v319
        %v321 = vpop.xlane.xlu0 %320
        %v322 = vrot.slane %v321, 4
        %v323 = vadd.f32 %v321, %v322
        %v324 = vrot.slane %v323, 2
        %v325 = vadd.f32 %v323, %v324
        %v326 = vrot.slane %v325, 1
        %v327 = vadd.f32 %v325, %v326
        %s328 = vtos %v327
        %329 = vrot.lane.b32.xlu0 %v165, 120
        %v330 = vpop.permute.xlu0 %329
        %331 = vrot.lane.b32.xlu0 %v166, 120
        %v332 = vpop.permute.xlu0 %331
        %333 = vrot.lane.b32.xlu0 %v167, 120
        %v334 = vpop.permute.xlu0 %333
        %335 = vrot.lane.b32.xlu0 %v168, 120
        %v336 = vpop.permute.xlu0 %335
        %337 = vrot.lane.b32.xlu0 %v169, 120
        %v338 = vpop.permute.xlu0 %337
        %339 = vrot.lane.b32.xlu0 %v170, 120
        %v340 = vpop.permute.xlu0 %339
        %341 = vrot.lane.b32.xlu0 %v171, 120
        %v342 = vpop.permute.xlu0 %341
        %343 = vrot.lane.b32.xlu0 %v172, 120
        %v344 = vpop.permute.xlu0 %343
        %v353 = vsub.f32 %v165, %v330
        %v354 = vsub.f32 %v166, %v332
        %v355 = vsub.f32 %v167, %v334
        %v356 = vsub.f32 %v168, %v336
        %v357 = vsub.f32 %v169, %v338
        %v358 = vsub.f32 %v170, %v340
        %v359 = vsub.f32 %v171, %v342
        %v360 = vsub.f32 %v172, %v344
        %v361 = vmul.f32 %v353, %v353
        %v362 = vmul.f32 %v354, %v354
        %v363 = vmul.f32 %v355, %v355
        %v364 = vmul.f32 %v356, %v356
        %v365 = vmul.f32 %v357, %v357
        %v366 = vmul.f32 %v358, %v358
        %v367 = vmul.f32 %v359, %v359
        %v368 = vmul.f32 %v360, %v360
        %v369 = vsel %vm304, %v361, 0.0
        %v370 = vsel %vm304, %v362, 0.0
        %v371 = vadd.f32 %v369, %v370
        %v372 = vsel %vm304, %v363, 0.0
        %v373 = vadd.f32 %v371, %v372
        %v374 = vsel %vm304, %v364, 0.0
        %v375 = vadd.f32 %v373, %v374
        %v376 = vsel %vm304, %v365, 0.0
        %v377 = vadd.f32 %v375, %v376
        %v378 = vsel %vm304, %v366, 0.0
        %v379 = vadd.f32 %v377, %v378
        %v380 = vsel %vm304, %v367, 0.0
        %v381 = vadd.f32 %v379, %v380
        %v382 = vsel %vm304, %v368, 0.0
        %v383 = vadd.f32 %v381, %v382
        %384 = vadd.xlane.f32.xlu0 %v383
        %v385 = vpop.xlane.xlu0 %384
        %v386 = vrot.slane %v385, 4
        %v387 = vadd.f32 %v385, %v386
        %v388 = vrot.slane %v387, 2
        %v389 = vadd.f32 %v387, %v388
        %v390 = vrot.slane %v389, 1
        %v391 = vadd.f32 %v389, %v390
        %s392 = vtos %v391
        %s393 = ssub.f32 %s328, %s328
        %s394 = sadd.f32 %s393, %s392
        %v395 = vlaneseq
        %v396 = vand.u32 %v395, 127
        %vm397 = vcmp.eq.s32.totalorder %v396, 0
        %v398 = vstv %s197
        %v399 = vsel %vm397, %v398, 0.0
        %vm400 = vcmp.eq.s32.totalorder %v396, 1
        %v401 = vstv %s328
        %v402 = vsel %vm400, %v401, 0.0
        %v403 = vadd.f32 %v399, %v402
        %vm404 = vcmp.eq.s32.totalorder %v396, 2
        %v405 = vstv %s223
        %v406 = vsel %vm404, %v405, 0.0
        %v407 = vadd.f32 %v403, %v406
        %vm408 = vcmp.eq.s32.totalorder %v396, 3
        %v409 = vstv %s394
        %v410 = vsel %vm408, %v409, 0.0
        %v411 = vadd.f32 %v407, %v410
        %p412 = scmp.eq.s32.totalorder %s25, 0
        // Predicated region
        $region29: #{tpu_custom_call.1} parent=23 // pred_check
          %p413 = pneg %p412
        $region30: #{tpu_custom_call.1} parent=23 // pred_check_branch
          %415 = sbr.rel (%p413) target = $region32
        $region31: #{tpu_custom_call.1} parent=23 // pred_region
          %416 = vst [vmem:[%s162] sm:$0x1] 0.0
        $region32: #{tpu_custom_call.1} parent=23 // pred_fallthru
          _
        %v417 = vld [vmem:[%s162] sm:$0x1]
        %v418 = vadd.f32 %v417, %v411
        %419 = vst [vmem:[%s162] sm:$0x1] %v418
        %s420 = sand.u32 %s77, 1
        %s421 = scalar_lea.sflag [#allocation4], %s420
        %s422 = sand.u32 %s77, 1
        %s423 = scalar_lea.vmem [#allocation5], %s422
        // Predicated region
        $region33: #{tpu_custom_call.1} parent=23 // pred_check
          %p424 = pneg %p87
        $region34: #{tpu_custom_call.1} parent=23 // pred_check_branch
          %426 = sbr.rel (%p424) target = $region36
        $region35: #{tpu_custom_call.1} parent=23 // pred_region
          %s428 = ssub.s32 16, 16
          %429 = vsyncadd %s421, %s428
          %s430 = sadd.s32 %s24, %s23
          %s431 = smul.addr %s430, 16
          %s432 = scalar_lea.hbm %s1, %s431
          %s434 = sshll.u32 %s423, 4
          %s435 = int_to_ptr.vmem [resolvable:$true] %s434
          %437 = dma.vmem_to_hbm [thread:$0]  %s435, 16, %s432, %s421
        $region36: #{tpu_custom_call.1} parent=23 // pred_fallthru
          _
      $region24: #{tpu_custom_call.1} parent=5 // pred_fallthru
        _
      %p438 = scmp.le.s32.totalorder 2, %s13
      // Predicated region
      $region37: #{tpu_custom_call.1} parent=5 // pred_check
        %p439 = pneg %p438
      $region38: #{tpu_custom_call.1} parent=5 // pred_check_branch
        %441 = sbr.rel (%p439) target = $region40
      $region39: #{tpu_custom_call.1} parent=5 // pred_region
        %s442 = ssub.s32 %s13, 2
        // Predicated region
        $region41: #{tpu_custom_call.1} parent=39 // pred_check
          %p443 = pneg %p93
        $region42: #{tpu_custom_call.1} parent=39 // pred_check_branch
          %445 = sbr.rel (%p443) target = $region44
        $region43: #{tpu_custom_call.1} parent=39 // pred_region
          %s446 = sand.u32 %s78, 1
          %s447 = scalar_lea.sflag [#allocation4], %s446
          %s448 = sand.u32 %s78, 1
          %s449 = scalar_lea.vmem [#allocation5], %s448
          %450 = dma.done %s447, 16
        $region44: #{tpu_custom_call.1} parent=39 // pred_fallthru
          _
      $region40: #{tpu_custom_call.1} parent=5 // pred_fallthru
        _
    $region6: #{tpu_custom_call.1} parent=1 // loop_footer
      %s17 = sadd.s32 1, %s13
    $region7: #{tpu_custom_call.1} parent=1 // loop_footer_branch
      %12 = sbr.rel target = $region3
    $region8: #{tpu_custom_call.1} parent=1 // loop_exit
      _
    %451 = vsyncpa [#allocation3], 1
    %s452 = scalar_lea.sflag [#allocation3], 1
    %453 = vsyncpa %s452, 1
    %454 = vsyncpa [#allocation4], 1
    %s455 = scalar_lea.sflag [#allocation4], 1
    %456 = vsyncpa %s455, 1

</llo_original>
